<compile_context>
chip_gen: v6e
topology: v6e:2x2x1
jax: 0.10.0
libtpu: 0.0.40
codegen_flags: <defaults>
</compile_context>

<pallas_src>
import jax
import jax.numpy as jnp
from jax.experimental import pallas as pl
from jax.experimental.pallas import tpu as pltpu


LANE = 128                 # TPU lane width (pad hidden dim to this)
SUBLANE_BF16 = 16          # bf16 sublane packing for the batch axis
MAX_TILE_B = 8192          # max rows per grid step (tiny footprint per tile)
SMALL_BATCH_THRESHOLD = 512  # below this, plain XLA beats kernel launch overhead


def _round_up(x, m):
    return ((x + m - 1) // m) * m


def _cdiv(a, b):
    return (a + b - 1) // b


def qnetwork_kernel(x_ref, w1_ref, b1_ref, w2_ref, b2_ref, o_ref):
    # fc1: [tile_b, D_in](bf16) @ [D_in, H_pad](bf16) -> f32 accumulation (MXU),
    # bias + ReLU in f32.
    h = jnp.dot(x_ref[...], w1_ref[...], preferred_element_type=jnp.float32)
    h = jnp.maximum(h + b1_ref[...], 0.0)
    # fc2 fully in f32: [tile_b, H_pad] @ [H_pad, D_out] + bias.
    o_ref[...] = (
        jnp.dot(h, w2_ref[...], preferred_element_type=jnp.float32) + b2_ref[...]
    )


def prepare_qnetwork_params(w1, b1, w2, b2):
    """One-time padding / casting of parameters (do NOT call per forward).

    w1: [D_in, H] f32, b1: [1, H] f32, w2: [H, D_out] f32, b2: [1, D_out] f32.
    Returns (w1_p bf16 [D_in, H_pad], b1_p f32 [1, H_pad],
             w2_p f32 [H_pad, D_out], b2_p f32 [1, D_out]).
    """
    D_in, H = w1.shape
    D_out = w2.shape[1]
    H_pad = _round_up(H, LANE)  # 64 -> 128, lane-aligned intermediate

    w1_p = jnp.zeros((D_in, H_pad), jnp.bfloat16).at[:, :H].set(
        w1.astype(jnp.bfloat16))
    b1_p = jnp.zeros((1, H_pad), jnp.float32).at[:, :H].set(
        b1.astype(jnp.float32))
    # Padded hidden columns are ReLU(0 + 0) = 0 and hit zero rows of w2_p,
    # so the padding is exact.
    w2_p = jnp.zeros((H_pad, D_out), jnp.float32).at[:H, :].set(
        w2.astype(jnp.float32))
    b2_p = b2.astype(jnp.float32).reshape(1, D_out)
    return (w1_p, b1_p, w2_p, b2_p)


def qnetwork_forward_pallas(x, params):
    """x: [B, D_in] f32; params from prepare_qnetwork_params. Returns [B, D_out] f32."""
    w1_p, b1_p, w2_p, b2_p = params
    B, D_in = x.shape
    H_pad = w1_p.shape[1]
    D_out = w2_p.shape[1]

    # ---- batch tiling -------------------------------------------------------
    # Keep tiles a multiple of 16 (bf16 sublanes), bound per-call padding waste,
    # and use >= 2 grid steps when possible so the parallel axis can shard
    # across v7x's two TensorCores.
    B16 = _round_up(max(B, 1), SUBLANE_BF16)
    if B16 <= SUBLANE_BF16:
        num_tiles = 1
    else:
        num_tiles = max(2, _cdiv(B16, MAX_TILE_B))
    tile_b = _round_up(_cdiv(B16, num_tiles), SUBLANE_BF16)
    B_pad = tile_b * num_tiles

    # ---- cast (and pad only if needed) the activations ----------------------
    x_bf16 = x.astype(jnp.bfloat16)
    if B_pad != B:
        x_bf16 = jnp.zeros((B_pad, D_in), jnp.bfloat16).at[:B, :].set(x_bf16)

    # ---- advisory cost estimate ---------------------------------------------
    flops = 2 * B_pad * (D_in * H_pad + H_pad * D_out)
    bytes_accessed = (x_bf16.size * 2 + w1_p.size * 2
                      + (b1_p.size + w2_p.size + b2_p.size) * 4
                      + B_pad * D_out * 4)
    cost = pl.CostEstimate(flops=flops, transcendentals=0,
                           bytes_accessed=bytes_accessed)

    out_padded = pl.pallas_call(
        qnetwork_kernel,
        out_shape=jax.ShapeDtypeStruct((B_pad, D_out), jnp.float32),
        grid_spec=pl.GridSpec(
            grid=(num_tiles,),
            in_specs=[
                # activations: tiled along the batch axis
                pl.BlockSpec((tile_b, D_in), lambda i: (i, 0)),
                # weights / biases: single block, VMEM-resident across the grid
                pl.BlockSpec((D_in, H_pad), lambda i: (0, 0)),
                pl.BlockSpec((1, H_pad), lambda i: (0, 0)),
                pl.BlockSpec((H_pad, D_out), lambda i: (0, 0)),
                pl.BlockSpec((1, D_out), lambda i: (0, 0)),
            ],
            # Unpadded output: last block dim equals the full array dim (legal),
            # so no padded writeback and no post-kernel slice pass over HBM.
            out_specs=pl.BlockSpec((tile_b, D_out), lambda i: (i, 0)),
        ),
        compiler_params=pltpu.CompilerParams(
            dimension_semantics=("parallel",),
        ),
        cost_estimate=cost,
    )(x_bf16, w1_p, b1_p, w2_p, b2_p)

    if B_pad != B:
        out_padded = out_padded[:B, :]
    return out_padded


def qnetwork_forward_xla(x, params):
    """Plain-XLA fallback for tiny batches (kernel launch overhead dominates)."""
    w1_p, b1_p, w2_p, b2_p = params
    h = jnp.maximum(
        jnp.dot(x.astype(jnp.bfloat16), w1_p,
                preferred_element_type=jnp.float32) + b1_p, 0.0)
    return jnp.dot(h, w2_p, preferred_element_type=jnp.float32) + b2_p


def qnetwork_forward(x, params):
    """Dispatch on (static) batch size: tiny batches are faster in plain XLA."""
    if x.shape[0] < SMALL_BATCH_THRESHOLD:
        return qnetwork_forward_xla(x, params)
    return qnetwork_forward_pallas(x, params)


def init_linear_params(key, in_features, out_features):
    # Deterministic init mimicking PyTorch nn.Linear: U(-1/sqrt(fan_in), 1/sqrt(fan_in)).
    kw, kb = jax.random.split(key)
    bound = 1.0 / jnp.sqrt(jnp.float32(in_features))
    # Stored as [in, out] (transposed vs. PyTorch's [out, in]) so the kernel does x @ W.
    w = jax.random.uniform(kw, (in_features, out_features), jnp.float32, -bound, bound)
    b = jax.random.uniform(kb, (1, out_features), jnp.float32, -bound, bound)
    return w, b


if __name__ == "__main__":
    input_size = 16
    hidden_size = 64   # fixed by the module definition
    output_size = 4
    batch = 8

    key = jax.random.PRNGKey(0)
    kx, k1, k2 = jax.random.split(key, 3)

    x = jax.random.normal(kx, (batch, input_size), jnp.float32)
    w1, b1 = init_linear_params(k1, input_size, hidden_size)
    w2, b2 = init_linear_params(k2, hidden_size, output_size)

    # One-time parameter prep (padding + bf16 cast hoisted out of the forward).
    params = prepare_qnetwork_params(w1, b1, w2, b2)

    # Call the Pallas path directly so the kernel is exercised even at batch=8.
    fwd = jax.jit(qnetwork_forward_pallas)
    out = jax.block_until_ready(fwd(x, params))
    assert out.shape == (batch, output_size)

    # Reference 1: bf16 fc1 / f32 fc2, matching the kernel's dtype choices.
    h_ref = jnp.maximum(
        jnp.dot(x.astype(jnp.bfloat16), w1.astype(jnp.bfloat16),
                preferred_element_type=jnp.float32) + b1, 0.0)
    ref_mixed = jnp.dot(h_ref, w2, preferred_element_type=jnp.float32) + b2
    assert jnp.allclose(out, ref_mixed, atol=2e-3, rtol=2e-3)

    # Reference 2: full-f32 PyTorch-equivalent forward (loose tol for bf16 fc1).
    ref_f32 = jnp.maximum(x @ w1 + b1, 0.0) @ w2 + b2
    assert jnp.allclose(out, ref_f32, atol=5e-2, rtol=5e-2)

    print("KERNEL_OK")
</pallas_src>

<mosaic_0001>
module attributes {stable_mosaic.version = 11 : i64} {
  func.func @qnetwork_kernel(%arg0: i32, %arg1: memref<16x16xbf16, #tpu.memory_space<vmem>>, %arg2: memref<16x128xbf16, #tpu.memory_space<vmem>>, %arg3: memref<1x128xf32, #tpu.memory_space<vmem>>, %arg4: memref<128x4xf32, #tpu.memory_space<vmem>>, %arg5: memref<1x4xf32, #tpu.memory_space<vmem>>, %arg6: memref<16x4xf32, #tpu.memory_space<vmem>>) attributes {dimension_semantics = [#tpu.dimension_semantics<parallel>], iteration_bounds = array<i64: 1>, scalar_prefetch = 0 : i64, scratch_operands = 0 : i64, tpu.core_type = #tpu.core_type<tc>, window_params = [{transform_indices = @transform_0, window_bounds = array<i64: 16, 16>}, {pipeline_mode = #tpu.pipeline_mode<synchronous>, transform_indices = @transform_1, window_bounds = array<i64: 16, 128>}, {pipeline_mode = #tpu.pipeline_mode<synchronous>, transform_indices = @transform_2, window_bounds = array<i64: 1, 128>}, {pipeline_mode = #tpu.pipeline_mode<synchronous>, transform_indices = @transform_3, window_bounds = array<i64: 128, 4>}, {pipeline_mode = #tpu.pipeline_mode<synchronous>, transform_indices = @transform_4, window_bounds = array<i64: 1, 4>}, {transform_indices = @transform_5, window_bounds = array<i64: 16, 4>}]} {
    %c0 = arith.constant 0 : index
    %c0_0 = arith.constant 0 : index
    %0 = vector.load %arg1[%c0, %c0_0] : memref<16x16xbf16, #tpu.memory_space<vmem>>, vector<16x16xbf16>
    %c0_1 = arith.constant 0 : index
    %c0_2 = arith.constant 0 : index
    %1 = vector.load %arg2[%c0_1, %c0_2] : memref<16x128xbf16, #tpu.memory_space<vmem>>, vector<16x128xbf16>
    %cst = arith.constant dense<0.000000e+00> : vector<16x128xf32>
    %2 = tpu.matmul %0, %1, %cst {dimension_numbers = #tpu.dot_dimension_numbers<[1], [0], [0], [1], [0, 0, 1, 1], [], []>} : vector<16x16xbf16>, vector<16x128xbf16>, vector<16x128xf32> -> vector<16x128xf32>
    %c0_3 = arith.constant 0 : index
    %c0_4 = arith.constant 0 : index
    %3 = vector.load %arg3[%c0_3, %c0_4] : memref<1x128xf32, #tpu.memory_space<vmem>>, vector<1x128xf32>
    %4 = vector.broadcast %3 : vector<1x128xf32> to vector<16x128xf32>
    %5 = arith.addf %2, %4 : vector<16x128xf32>
    %cst_5 = arith.constant 0.000000e+00 : f32
    %6 = vector.broadcast %cst_5 : f32 to vector<16x128xf32>
    %7 = arith.maximumf %5, %6 : vector<16x128xf32>
    %c0_6 = arith.constant 0 : index
    %c0_7 = arith.constant 0 : index
    %8 = vector.load %arg4[%c0_6, %c0_7] : memref<128x4xf32, #tpu.memory_space<vmem>>, vector<128x4xf32>
    %cst_8 = arith.constant dense<0.000000e+00> : vector<16x4xf32>
    %9 = tpu.matmul %7, %8, %cst_8 {dimension_numbers = #tpu.dot_dimension_numbers<[1], [0], [0], [1], [0, 0, 1, 1], [], []>} : vector<16x128xf32>, vector<128x4xf32>, vector<16x4xf32> -> vector<16x4xf32>
    %c0_9 = arith.constant 0 : index
    %c0_10 = arith.constant 0 : index
    %10 = vector.load %arg5[%c0_9, %c0_10] : memref<1x4xf32, #tpu.memory_space<vmem>>, vector<1x4xf32>
    %11 = vector.broadcast %10 : vector<1x4xf32> to vector<16x4xf32>
    %12 = arith.addf %9, %11 : vector<16x4xf32>
    %c0_11 = arith.constant 0 : index
    %c0_12 = arith.constant 0 : index
    %13 = vector.load %arg6[%c0_11, %c0_12] : memref<16x4xf32, #tpu.memory_space<vmem>>, vector<16x4xf32>
    tpu.vector_store %arg6[%c0_11, %c0_12], %12 {strides = array<i32>} : memref<16x4xf32, #tpu.memory_space<vmem>>, vector<16x4xf32>,
    return
  }
  func.func @transform_0(%arg0: i32) -> (i32, i32) {
    %c0_i32 = arith.constant 0 : i32
    %c0_i32_0 = arith.constant 0 : i32
    return %arg0, %c0_i32 : i32, i32
  }
  func.func @transform_1(%arg0: i32) -> (i32, i32) {
    %c0_i32 = arith.constant 0 : i32
    %c0_i32_0 = arith.constant 0 : i32
    %c0_i32_1 = arith.constant 0 : i32
    return %c0_i32, %c0_i32_0 : i32, i32
  }
  func.func @transform_2(%arg0: i32) -> (i32, i32) {
    %c0_i32 = arith.constant 0 : i32
    %c0_i32_0 = arith.constant 0 : i32
    %c0_i32_1 = arith.constant 0 : i32
    return %c0_i32, %c0_i32_0 : i32, i32
  }
  func.func @transform_3(%arg0: i32) -> (i32, i32) {
    %c0_i32 = arith.constant 0 : i32
    %c0_i32_0 = arith.constant 0 : i32
    %c0_i32_1 = arith.constant 0 : i32
    return %c0_i32, %c0_i32_0 : i32, i32
  }
  func.func @transform_4(%arg0: i32) -> (i32, i32) {
    %c0_i32 = arith.constant 0 : i32
    %c0_i32_0 = arith.constant 0 : i32
    %c0_i32_1 = arith.constant 0 : i32
    return %c0_i32, %c0_i32_0 : i32, i32
  }
  func.func @transform_5(%arg0: i32) -> (i32, i32) {
    %c0_i32 = arith.constant 0 : i32
    %c0_i32_0 = arith.constant 0 : i32
    return %arg0, %c0_i32 : i32, i32
  }
}

</mosaic_0001>

<llo_original>
// kernel: qnetwork_forward_pallas.1
$region0: #{qnetwork_forward_pallas.1}
  #allocation0 [shape = 'u32[]', space=smem, size = 0x4, offset = 0x4, fixed_abs, tag = 'smem constant byte address 0x4 - core index']
  #allocation1 [shape = 'u32[144,128]{1,0:T(1,128)}', space=vmem, size = 0x12000, scoped, tag = 'internal scratch']
  %s0 = inlined_call_operand.vmem [shape: bf16[16,16], index: 0, kind: input, shape index: {}]
  %s1 = inlined_call_operand.vmem [shape: bf16[16,128], index: 1, kind: input, shape index: {}]
  %s2 = inlined_call_operand.vmem [shape: f32[1,128], index: 2, kind: input, shape index: {}]
  %s3 = inlined_call_operand.vmem [shape: f32[128,4], index: 3, kind: input, shape index: {}]
  %s4 = inlined_call_operand.vmem [shape: f32[1,4], index: 4, kind: input, shape index: {}]
  %s5 = inlined_call_operand.vmem [shape: f32[16,4], index: 5, kind: output, shape index: {}]
  %s6 = sld [smem:[#allocation0]]
  $region30: #{qnetwork_forward_pallas.1} parent=0
    _
  %s8 = ssub.s32 1, %s6
  %s9 = scalar_select 0, %s8, %s6
  // Predicated region
  $region2: #{qnetwork_forward_pallas.1} parent=0 // pred_check
    _
  $region3: #{qnetwork_forward_pallas.1} parent=0 // pred_check_branch
    %11 = sbr.rel (0) target = $region5
  $region4: #{qnetwork_forward_pallas.1} parent=0 // pred_region
    _
  $region5: #{qnetwork_forward_pallas.1} parent=0 // pred_fallthru
    _
  // Predicated region
  $region6: #{qnetwork_forward_pallas.1} parent=0 // pred_check
    _
  $region7: #{qnetwork_forward_pallas.1} parent=0 // pred_check_branch
    %13 = sbr.rel (0) target = $region9
  $region8: #{qnetwork_forward_pallas.1} parent=0 // pred_region
    _
  $region9: #{qnetwork_forward_pallas.1} parent=0 // pred_fallthru
    _
  // Predicated region
  $region10: #{qnetwork_forward_pallas.1} parent=0 // pred_check
    _
  $region11: #{qnetwork_forward_pallas.1} parent=0 // pred_check_branch
    %15 = sbr.rel (0) target = $region13
  $region12: #{qnetwork_forward_pallas.1} parent=0 // pred_region
    _
  $region13: #{qnetwork_forward_pallas.1} parent=0 // pred_fallthru
    _
  // Predicated region
  $region14: #{qnetwork_forward_pallas.1} parent=0 // pred_check
    _
  $region15: #{qnetwork_forward_pallas.1} parent=0 // pred_check_branch
    %17 = sbr.rel (0) target = $region17
  $region16: #{qnetwork_forward_pallas.1} parent=0 // pred_region
    _
  $region17: #{qnetwork_forward_pallas.1} parent=0 // pred_fallthru
    _
  // Predicated region
  $region18: #{qnetwork_forward_pallas.1} parent=0 // pred_check
    _
  $region19: #{qnetwork_forward_pallas.1} parent=0 // pred_check_branch
    %19 = sbr.rel (0) target = $region21
  $region20: #{qnetwork_forward_pallas.1} parent=0 // pred_region
    _
  $region21: #{qnetwork_forward_pallas.1} parent=0 // pred_fallthru
    _
  %v21 = vld [vmem:[%s0] sm:$0xf]
  %v22 = vld [vmem:[%s0 + $0x4] sm:$0xf]
  %v23 = vld [vmem:[%s1] sm:$0xf]
  %v24 = vld [vmem:[%s1 + $0x4] sm:$0xf]
  %v25 = vld [vmem:[%s2] sm:$0x1]
  %v27 = vlaneseq
  %v28 = vshrl.u32 %v27, 7
  %v29 = vsub.s32 0, %v28
  %v30 = vrot.slane %v25, %v29
  %v34 = vunpack.c.l.b16 %v21
  %v35 = vunpack.c.l.b16 %v22
  %v36 = vpack.c.b16 %v35, %v34
  %v39 = vunpack.c.l.b16 %v23
  %v40 = vunpack.c.l.b16 %v24
  %v41 = vpack.c.b16 %v40, %v39
  %vm43 = vcmask 130048
  %v45 = vsel %vm43, %v36, 0
  %47 = vmatprep.subr.bf16.mxu0 0
  %48 = vmatpush1.bf16.msra.mxu0 0
  %49 = vmatprep.subr.bf16.mxu0 0
  %50 = vmatpush1.bf16.msra.mxu0 0
  %51 = vmatprep.subr.bf16.mxu0 0
  %52 = vmatpush1.bf16.msra.mxu0 0
  %53 = vmatprep.subr.bf16.mxu0 0
  %54 = vmatpush1.bf16.msra.mxu0 0
  %55 = vmatprep.subr.bf16.mxu0 0
  %56 = vmatpush1.bf16.msra.mxu0 0
  %57 = vmatprep.subr.bf16.mxu0 0
  %58 = vmatpush1.bf16.msra.mxu0 0
  %59 = vmatprep.subr.bf16.mxu0 0
  %60 = vmatpush1.bf16.msra.mxu0 0
  %61 = vmatprep.subr.bf16.mxu0 0
  %62 = vmatpush1.bf16.msra.mxu0 %v41
  %63 = vmatprep.subr.bf16.mxu0 0
  %64 = vmatpush2.bf16.msra.mxu0 0
  %65 = vmatprep.subr.bf16.mxu0 0
  %66 = vmatpush2.bf16.msra.mxu0 0
  %67 = vmatprep.subr.bf16.mxu0 0
  %68 = vmatpush2.bf16.msra.mxu0 0
  %69 = vmatprep.subr.bf16.mxu0 0
  %70 = vmatpush2.bf16.msra.mxu0 0
  %71 = vmatprep.subr.bf16.mxu0 0
  %72 = vmatpush2.bf16.msra.mxu0 0
  %73 = vmatprep.subr.bf16.mxu0 0
  %74 = vmatpush2.bf16.msra.mxu0 0
  %75 = vmatprep.subr.bf16.mxu0 0
  %76 = vmatpush2.bf16.msra.mxu0 0
  %77 = vmatprep.subr.bf16.mxu0 0
  %78 = vmatpush2.bf16.msra.mxu0 0
  %79 = vmatprep.mubr.bf16.mxu0 0
  %80 = vmatmul.mubr.bf16.gmra.mxu0 %v45
  %v81 = vpop.f32.mrf.mxu0
  %v82 = vadd.f32 %v30, %v81
  %v83 = vpop.f32.mrf.mxu0
  %v84 = vpop.f32.mrf.mxu0
  %v85 = vadd.f32 %v30, %v84
  %v86 = vpop.f32.mrf.mxu0
  %87 = vdwg.mxu0
  %v88 = vmax.f32 %v82, 0.0
  %v89 = vmax.f32 %v85, 0.0
  %v90 = vld [vmem:[%s3] sm:$0xff]
  %v91 = vld [vmem:[%s3 + $0x8] sm:$0xff]
  %v92 = vld [vmem:[%s3 + $0x10] sm:$0xff]
  %v93 = vld [vmem:[%s3 + $0x18] sm:$0xff]
  %v94 = vld [vmem:[%s3 + $0x20] sm:$0xff]
  %v95 = vld [vmem:[%s3 + $0x28] sm:$0xff]
  %v96 = vld [vmem:[%s3 + $0x30] sm:$0xff]
  %v97 = vld [vmem:[%s3 + $0x38] sm:$0xff]
  %v98 = vld [vmem:[%s3 + $0x40] sm:$0xff]
  %v99 = vld [vmem:[%s3 + $0x48] sm:$0xff]
  %v100 = vld [vmem:[%s3 + $0x50] sm:$0xff]
  %v101 = vld [vmem:[%s3 + $0x58] sm:$0xff]
  %v102 = vld [vmem:[%s3 + $0x60] sm:$0xff]
  %v103 = vld [vmem:[%s3 + $0x68] sm:$0xff]
  %v104 = vld [vmem:[%s3 + $0x70] sm:$0xff]
  %v105 = vld [vmem:[%s3 + $0x78] sm:$0xff]
  %v106 = vld [vmem:[%s4] sm:$0x1]
  %v108 = vlaneseq
  %v109 = vshrl.u32 %v108, 7
  %v110 = vsub.s32 0, %v109
  %v111 = vrot.slane %v106, %v110
  %113 = vmatprep.subr.mxu0 0.0
  %114 = vmatpush1.msra.mxu0 %v105
  %115 = vmatprep.subr.mxu0 0.0
  %116 = vmatpush1.msra.mxu0 %v104
  %117 = vmatprep.subr.mxu0 0.0
  %118 = vmatpush1.msra.mxu0 %v103
  %119 = vmatprep.subr.mxu0 0.0
  %120 = vmatpush1.msra.mxu0 %v102
  %121 = vmatprep.subr.mxu0 0.0
  %122 = vmatpush1.msra.mxu0 %v101
  %123 = vmatprep.subr.mxu0 0.0
  %124 = vmatpush1.msra.mxu0 %v100
  %125 = vmatprep.subr.mxu0 0.0
  %126 = vmatpush1.msra.mxu0 %v99
  %127 = vmatprep.subr.mxu0 0.0
  %128 = vmatpush1.msra.mxu0 %v98
  %129 = vmatprep.subr.mxu0 0.0
  %130 = vmatpush1.msra.mxu0 %v97
  %131 = vmatprep.subr.mxu0 0.0
  %132 = vmatpush1.msra.mxu0 %v96
  %133 = vmatprep.subr.mxu0 0.0
  %134 = vmatpush1.msra.mxu0 %v95
  %135 = vmatprep.subr.mxu0 0.0
  %136 = vmatpush1.msra.mxu0 %v94
  %137 = vmatprep.subr.mxu0 0.0
  %138 = vmatpush1.msra.mxu0 %v93
  %139 = vmatprep.subr.mxu0 0.0
  %140 = vmatpush1.msra.mxu0 %v92
  %141 = vmatprep.subr.mxu0 0.0
  %142 = vmatpush1.msra.mxu0 %v91
  %143 = vmatprep.subr.mxu0 0.0
  %144 = vmatpush1.msra.mxu0 %v90
  %145 = vmatprep.subr.mxu0 0.0
  %146 = vmatpush2.msra.mxu0 0.0
  %147 = vmatprep.subr.mxu0 0.0
  %148 = vmatpush2.msra.mxu0 0.0
  %149 = vmatprep.subr.mxu0 0.0
  %150 = vmatpush2.msra.mxu0 0.0
  %151 = vmatprep.subr.mxu0 0.0
  %152 = vmatpush2.msra.mxu0 0.0
  %153 = vmatprep.subr.mxu0 0.0
  %154 = vmatpush2.msra.mxu0 0.0
  %155 = vmatprep.subr.mxu0 0.0
  %156 = vmatpush2.msra.mxu0 0.0
  %157 = vmatprep.subr.mxu0 0.0
  %158 = vmatpush2.msra.mxu0 0.0
  %159 = vmatprep.subr.mxu0 0.0
  %160 = vmatpush2.msra.mxu0 0.0
  %161 = vmatprep.subr.mxu0 0.0
  %162 = vmatpush2.msra.mxu0 0.0
  %163 = vmatprep.subr.mxu0 0.0
  %164 = vmatpush2.msra.mxu0 0.0
  %165 = vmatprep.subr.mxu0 0.0
  %166 = vmatpush2.msra.mxu0 0.0
  %167 = vmatprep.subr.mxu0 0.0
  %168 = vmatpush2.msra.mxu0 0.0
  %169 = vmatprep.subr.mxu0 0.0
  %170 = vmatpush2.msra.mxu0 0.0
  %171 = vmatprep.subr.mxu0 0.0
  %172 = vmatpush2.msra.mxu0 0.0
  %173 = vmatprep.subr.mxu0 0.0
  %174 = vmatpush2.msra.mxu0 0.0
  %175 = vmatprep.subr.mxu0 0.0
  %176 = vmatpush2.msra.mxu0 0.0
  %177 = vmatprep.mubr.f32.mxu0 0.0
  %178 = vmatmul.mubr.f32.gmra.mxu0 %v88
  %v179 = vpop.f32.mrf.mxu0
  %v180 = vadd.f32 %v111, %v179
  %v181 = vpop.f32.mrf.mxu0
  %182 = vmatprep.mubr.f32.mxu0 0.0
  %183 = vmatmul.mubr.f32.gmra.mxu0 %v89
  %v184 = vpop.f32.mrf.mxu0
  %v185 = vadd.f32 %v111, %v184
  %v186 = vpop.f32.mrf.mxu0
  %187 = vdwg.mxu0
  %vm188 = vcmask 31744
  %189 = vst.msk [vmem:[%s5] sm:$0xff] %vm188, %v180
  %190 = vst.msk [vmem:[%s5 + $0x8] sm:$0xff] %vm188, %v185
  // Predicated region
  $region22: #{qnetwork_forward_pallas.1} parent=0 // pred_check
    _
  $region23: #{qnetwork_forward_pallas.1} parent=0 // pred_check_branch
    %192 = sbr.rel (0) target = $region25
  $region24: #{qnetwork_forward_pallas.1} parent=0 // pred_region
    _
  $region25: #{qnetwork_forward_pallas.1} parent=0 // pred_fallthru
    _
  // Predicated region
  $region26: #{qnetwork_forward_pallas.1} parent=0 // pred_check
    _
  $region27: #{qnetwork_forward_pallas.1} parent=0 // pred_check_branch
    %194 = sbr.rel (0) target = $region29
  $region28: #{qnetwork_forward_pallas.1} parent=0 // pred_region
    _
  $region29: #{qnetwork_forward_pallas.1} parent=0 // pred_fallthru
    _

</llo_original>
